<compile_context>
chip_gen: v7x
topology: tpu7x:2x2x1
jax: 0.10.0
libtpu: 0.0.40
codegen_flags: <defaults>
</compile_context>

<pallas_src>
import jax
import jax.numpy as jnp
from jax import lax
from jax.experimental import pallas as pl
from jax.experimental.pallas import tpu as pltpu

_SUBLANE = 8
_LANE = 128


def _round_up(x, m):
    return (x + m - 1) // m * m


def _device_profile():
    """Return (num_row_parts, vmem_limit_bytes) chosen per TPU generation."""
    kind = ""
    try:
        dev = jax.devices()[0]
        if dev.platform == "tpu":
            kind = str(getattr(dev, "device_kind", "")).lower()
    except Exception:
        pass
    if "v7" in kind or "7x" in kind:
        # 2 TensorCores / chip, 64 MiB VMEM per TC -> leave headroom for temporaries.
        return 2, 46 * 1024 * 1024
    if "v4" in kind or "v5p" in kind:
        # Megacore: 2 TensorCores behind one device, 128 MiB VMEM each.
        return 2, 96 * 1024 * 1024
    # v5e / v6e: single TensorCore, 128 MiB physical VMEM (and conservative default).
    return 1, 80 * 1024 * 1024


def _pick_rows(per_row_bytes, budget_bytes, total_rows):
    tn = budget_bytes // max(per_row_bytes, 1)
    tn = max(_SUBLANE, (tn // _SUBLANE) * _SUBLANE)
    return int(min(tn, _round_up(total_rows, _SUBLANE)))


def _focal_weight(one_minus_p, gamma):
    """(1 - p_t) ** gamma; small integer gamma lowered to repeated multiplies (no EUP pow)."""
    g = float(gamma)
    if g == int(g) and 0 <= int(g) <= 8:
        gi = int(g)
        if gi == 0:
            return jnp.ones_like(one_minus_p)
        w = one_minus_p
        for _ in range(gi - 1):
            w = w * one_minus_p
        return w
    return one_minus_p ** g


# ----------------------------------------------------------------------------------
# Lane-packed kernel (C divides 128, C <= 64): k = 128 // C original rows per packed row.
# ----------------------------------------------------------------------------------
def _make_packed_kernel(gamma, n_classes, k, tn, bpp, n_valid_rows):
    def kernel(logits_ref, tgt_ref, alpha_ref, sred_ref, sbc_ref, out_ref, acc_ref):
        p = pl.program_id(0)
        i = pl.program_id(1)

        @pl.when(i == 0)
        def _():
            acc_ref[...] = jnp.zeros_like(acc_ref)

        x = logits_ref[...].astype(jnp.float32)      # (tn, 128)  f32 math (v5e: no bf16 VPU)
        t = tgt_ref[...]                             # (tn, k)    targets as f32
        a_t = alpha_ref[...]                         # (tn, k)    alpha[targets]
        sred = sred_ref[...]                         # (128, k)   0/1 segment-reduce matrix
        sbc = sbc_ref[...]                           # (k, 128)   its transpose (broadcast)

        # Stability shift by the packed-row max (>= every segment max; exact up to an
        # intra-pack logit spread of ~87, guarded below).
        m = jnp.max(x, axis=1, keepdims=True)
        xs = x - m
        e = jnp.exp(xs)

        # Target one-hot inside each C-lane segment (target broadcast via exact 0/1 matmul).
        lane = lax.broadcasted_iota(jnp.int32, (1, _LANE), 1)
        lane_in_seg = (lane % n_classes).astype(jnp.float32)
        t_bcast = jnp.dot(t, sbc, preferred_element_type=jnp.float32)
        is_t = t_bcast == lane_in_seg
        xt_lane = jnp.where(is_t, xs, 0.0)

        def seg_reduce(v):
            # Segmented lane-sum on the MXU.  bf16 hi/lo split keeps ~f32 accuracy even if
            # the MXU rounds operands to bf16 (products with a 0/1 matrix are exact).
            hi = v.astype(jnp.bfloat16).astype(jnp.float32)
            lo = v - hi
            return (jnp.dot(hi, sred, preferred_element_type=jnp.float32)
                    + jnp.dot(lo, sred, preferred_element_type=jnp.float32))

        seg_sum = jnp.maximum(seg_reduce(e), jnp.float32(1e-37))    # (tn, k)
        xs_t = seg_reduce(xt_lane)                                  # (tn, k)

        log_p_t = xs_t - jnp.log(seg_sum)                           # x_t - logsumexp(row)
        p_t = jnp.exp(log_p_t)
        w = _focal_weight(1.0 - p_t, gamma)
        row_loss = -(w * a_t) * log_p_t                             # (tn, k)

        # Mask packed rows beyond the real row count (partial last block / clamped duplicate
        # tail steps).  Select (not multiply), so garbage VMEM can never reach the sum.
        blk = p * bpp + i
        ridx = blk * tn + lax.broadcasted_iota(jnp.int32, (tn, 1), 0)
        acc_ref[...] += jnp.where(ridx < n_valid_rows, row_loss, 0.0)

        @pl.when(i == pl.num_programs(1) - 1)
        def _():
            r = lax.broadcasted_iota(jnp.int32, (_SUBLANE, _LANE), 0)
            cc = lax.broadcasted_iota(jnp.int32, (_SUBLANE, _LANE), 1)
            out_ref[...] = jnp.where((r == 0) & (cc == 0), jnp.sum(acc_ref[...]), 0.0)

    return kernel


# ----------------------------------------------------------------------------------
# General kernel (any C): classes on the lane axis, one row per sublane row.
# ----------------------------------------------------------------------------------
def _make_general_kernel(gamma, n_classes, tn, bpp, n_valid_rows):
    def kernel(logits_ref, tgt_ref, alpha_ref, out_ref, acc_ref):
        p = pl.program_id(0)
        i = pl.program_id(1)

        @pl.when(i == 0)
        def _():
            acc_ref[...] = jnp.zeros_like(acc_ref)

        x = logits_ref[...].astype(jnp.float32)      # (tn, C)
        t = tgt_ref[...]                             # (tn, 1) int32
        a_t = alpha_ref[...]                         # (tn, 1) f32 (alpha[targets], from wrapper)

        m = jnp.max(x, axis=1, keepdims=True)
        xs = x - m
        s = jnp.sum(jnp.exp(xs), axis=1, keepdims=True)

        col = lax.broadcasted_iota(jnp.int32, (1, n_classes), 1)
        is_t = col == t
        x_t = jnp.sum(jnp.where(is_t, xs, 0.0), axis=1, keepdims=True)

        log_p_t = x_t - jnp.log(s)
        p_t = jnp.exp(log_p_t)
        w = _focal_weight(1.0 - p_t, gamma)
        row_loss = -(w * a_t) * log_p_t              # (tn, 1)

        blk = p * bpp + i
        ridx = blk * tn + lax.broadcasted_iota(jnp.int32, (tn, 1), 0)
        acc_ref[...] += jnp.where(ridx < n_valid_rows, row_loss, 0.0)

        @pl.when(i == pl.num_programs(1) - 1)
        def _():
            r = lax.broadcasted_iota(jnp.int32, (_SUBLANE, _LANE), 0)
            cc = lax.broadcasted_iota(jnp.int32, (_SUBLANE, _LANE), 1)
            out_ref[...] = jnp.where((r == 0) & (cc == 0), jnp.sum(acc_ref[...]), 0.0)

    return kernel


# ----------------------------------------------------------------------------------
# Wrappers
# ----------------------------------------------------------------------------------
def _focal_loss_packed(logits, targets, alpha, gamma, num_parts, vmem_limit):
    n, c = logits.shape
    k = _LANE // c
    np_rows = n // k

    logits_p = logits.reshape(np_rows, _LANE)                       # free row-major reshape
    t_p = targets.astype(jnp.float32).reshape(np_rows, k)
    a_p = jnp.take(alpha.astype(jnp.float32), targets).reshape(np_rows, k)

    if np_rows < _SUBLANE:                                          # tiny inputs only
        pad = _SUBLANE - np_rows
        logits_p = jnp.pad(logits_p, ((0, pad), (0, 0)))
        t_p = jnp.pad(t_p, ((0, pad), (0, 0)))
        a_p = jnp.pad(a_p, ((0, pad), (0, 0)))
    rows_total = logits_p.shape[0]

    jj = jnp.arange(_LANE, dtype=jnp.int32)
    gg = jnp.arange(k, dtype=jnp.int32)
    s_reduce = (jj[:, None] // c == gg[None, :]).astype(jnp.float32)  # (128, k)
    s_bcast = s_reduce.T                                              # (k, 128)

    itemsize = jnp.dtype(logits.dtype).itemsize
    # Padding-aware per-packed-row VMEM budget: lane-dense logits + 2 lane-padded side
    # blocks, each double-buffered, plus accumulator scratch and ~4 f32 temporaries.
    per_row = (2 * _LANE * itemsize
               + 2 * 2 * _round_up(k, _LANE) * 4
               + _round_up(k, _LANE) * 4
               + 4 * _LANE * 4)
    tn = _pick_rows(per_row, int(vmem_limit * 0.72), rows_total)

    nblocks = pl.cdiv(rows_total, tn)
    parts = max(1, min(num_parts, nblocks))
    bpp = pl.cdiv(nblocks, parts)

    def row_map(pi, ii):
        # Clamp so duplicate tail steps re-read the last valid block (their rows are masked
        # in-kernel using the *unclamped* row index) instead of issuing an OOB DMA.
        return (jnp.minimum(pi * bpp + ii, nblocks - 1), 0)

    kernel = _make_packed_kernel(float(gamma), c, k, tn, bpp, np_rows)

    partials = pl.pallas_call(
        kernel,
        out_shape=jax.ShapeDtypeStruct((parts * _SUBLANE, _LANE), jnp.float32),
        grid=(parts, bpp),
        in_specs=[
            pl.BlockSpec((tn, _LANE), row_map),
            pl.BlockSpec((tn, k), row_map),
            pl.BlockSpec((tn, k), row_map),
            pl.BlockSpec((_LANE, k), lambda pi, ii: (0, 0)),   # resident segment matrices
            pl.BlockSpec((k, _LANE), lambda pi, ii: (0, 0)),
        ],
        out_specs=pl.BlockSpec((_SUBLANE, _LANE), lambda pi, ii: (pi, 0)),
        scratch_shapes=[pltpu.VMEM((tn, k), jnp.float32)],
        compiler_params=pltpu.CompilerParams(
            dimension_semantics=("parallel", "arbitrary"),
            vmem_limit_bytes=int(vmem_limit),
        ),
        cost_estimate=pl.CostEstimate(
            flops=14 * n * c,
            transcendentals=n * c + 3 * n,
            bytes_accessed=n * c * itemsize + 8 * n + 2 * _LANE * k * 4,
        ),
    )(logits_p, t_p, a_p, s_reduce, s_bcast)
    return jnp.sum(partials)


def _focal_loss_general(logits, targets, alpha, gamma, num_parts, vmem_limit):
    n, c = logits.shape
    x = logits
    t2 = targets.astype(jnp.int32).reshape(n, 1)
    a2 = jnp.take(alpha.astype(jnp.float32), targets).reshape(n, 1)

    if n < _SUBLANE:                                                # tiny inputs only
        pad = _SUBLANE - n
        x = jnp.pad(x, ((0, pad), (0, 0)))
        t2 = jnp.pad(t2, ((0, pad), (0, 0)))
        a2 = jnp.pad(a2, ((0, pad), (0, 0)))
    rows_total = x.shape[0]

    itemsize = jnp.dtype(logits.dtype).itemsize
    cpad = _round_up(c, _LANE)
    per_row = (2 * cpad * itemsize
               + 2 * 2 * _LANE * 4
               + _LANE * 4
               + 3 * cpad * 4)
    tn = _pick_rows(per_row, int(vmem_limit * 0.72), rows_total)

    nblocks = pl.cdiv(rows_total, tn)
    parts = max(1, min(num_parts, nblocks))
    bpp = pl.cdiv(nblocks, parts)

    def row_map(pi, ii):
        return (jnp.minimum(pi * bpp + ii, nblocks - 1), 0)

    kernel = _make_general_kernel(float(gamma), c, tn, bpp, n)

    partials = pl.pallas_call(
        kernel,
        out_shape=jax.ShapeDtypeStruct((parts * _SUBLANE, _LANE), jnp.float32),
        grid=(parts, bpp),
        in_specs=[
            pl.BlockSpec((tn, c), row_map),
            pl.BlockSpec((tn, 1), row_map),
            pl.BlockSpec((tn, 1), row_map),
        ],
        out_specs=pl.BlockSpec((_SUBLANE, _LANE), lambda pi, ii: (pi, 0)),
        scratch_shapes=[pltpu.VMEM((tn, 1), jnp.float32)],
        compiler_params=pltpu.CompilerParams(
            dimension_semantics=("parallel", "arbitrary"),
            vmem_limit_bytes=int(vmem_limit),
        ),
        cost_estimate=pl.CostEstimate(
            flops=10 * n * c,
            transcendentals=n * c + 3 * n,
            bytes_accessed=n * c * itemsize + 8 * n,
        ),
    )(x, t2, a2)
    return jnp.sum(partials)


def focal_loss_multiclass(logits, targets, alpha=None, gamma=2.0, reduction="mean"):
    """Multi-class focal loss forward pass (FocalLoss(task_type='multi-class')).

    logits: (N, C) float (f32 or bf16); targets: (N,) int in [0, C); alpha: (C,) or None.
    Note: out-of-range target labels are not checked (PyTorch would raise).
    """
    n, c = logits.shape
    if alpha is None:
        alpha = jnp.ones((c,), jnp.float32)
    targets = targets.astype(jnp.int32)
    num_parts, vmem_limit = _device_profile()

    k = _LANE // c if (c <= 64 and _LANE % c == 0) else 0
    if k >= 2 and n % k == 0:
        total = _focal_loss_packed(logits, targets, alpha, gamma, num_parts, vmem_limit)
    else:
        total = _focal_loss_general(logits, targets, alpha, gamma, num_parts, vmem_limit)

    if reduction == "sum":
        return total
    # reduction == 'mean': mean over all N*C elements of the (sparse) loss matrix.
    return total / jnp.float32(n * c)


def _reference_focal_loss(logits, targets, alpha, gamma=2.0):
    probs = jax.nn.softmax(logits.astype(jnp.float32), axis=1)
    one_hot = jax.nn.one_hot(targets, logits.shape[1], dtype=jnp.float32)
    ce = -one_hot * jnp.log(probs)
    p_t = jnp.sum(probs * one_hot, axis=1)
    focal_w = (1.0 - p_t) ** gamma
    alpha_t = alpha[targets]
    loss = focal_w[:, None] * alpha_t[:, None] * ce
    return jnp.mean(loss)


if __name__ == "__main__":
    key = jax.random.PRNGKey(0)
    k1, k2, k3, k4 = jax.random.split(key, 4)

    # FocalLoss(gamma=2, alpha=per-class weights, task_type='multi-class', num_classes=8)
    N, C = 16, 8
    logits = jax.random.normal(k1, (N, C), dtype=jnp.float32)
    targets = jax.random.randint(k2, (N,), 0, C, dtype=jnp.int32)
    alpha = jnp.linspace(0.25, 1.0, C, dtype=jnp.float32)

    out = focal_loss_multiclass(logits, targets, alpha, gamma=2.0)
    jax.block_until_ready(out)
    ref = _reference_focal_loss(logits, targets, alpha, gamma=2.0)
    assert jnp.allclose(out, ref, rtol=1e-4, atol=1e-6), (out, ref)

    # Also exercise the general path (class count that does not divide 128).
    N2, C2 = 24, 10
    logits2 = jax.random.normal(k3, (N2, C2), dtype=jnp.float32)
    targets2 = jax.random.randint(k4, (N2,), 0, C2, dtype=jnp.int32)
    alpha2 = jnp.linspace(0.5, 1.5, C2, dtype=jnp.float32)
    out2 = focal_loss_multiclass(logits2, targets2, alpha2, gamma=2.0)
    jax.block_until_ready(out2)
    ref2 = _reference_focal_loss(logits2, targets2, alpha2, gamma=2.0)
    assert jnp.allclose(out2, ref2, rtol=1e-4, atol=1e-6), (out2, ref2)

    print("KERNEL_OK")
</pallas_src>

<mosaic_0001>
module attributes {stable_mosaic.version = 11 : i64} {
  func.func @kernel(%arg0: i32, %arg1: i32, %arg2: memref<8x128xf32, #tpu.memory_space<vmem>>, %arg3: memref<8x16xf32, #tpu.memory_space<vmem>>, %arg4: memref<8x16xf32, #tpu.memory_space<vmem>>, %arg5: memref<128x16xf32, #tpu.memory_space<vmem>>, %arg6: memref<16x128xf32, #tpu.memory_space<vmem>>, %arg7: memref<8x128xf32, #tpu.memory_space<vmem>>, %arg8: memref<8x16xf32, #tpu.memory_space<vmem>>) attributes {dimension_semantics = [#tpu.dimension_semantics<parallel>, #tpu.dimension_semantics<arbitrary>], iteration_bounds = array<i64: 1, 1>, scalar_prefetch = 0 : i64, scratch_operands = 1 : i64, tpu.core_type = #tpu.core_type<tc>, window_params = [{transform_indices = @transform_0, window_bounds = array<i64: 8, 128>}, {transform_indices = @transform_1, window_bounds = array<i64: 8, 16>}, {transform_indices = @transform_2, window_bounds = array<i64: 8, 16>}, {pipeline_mode = #tpu.pipeline_mode<synchronous>, transform_indices = @transform_3, window_bounds = array<i64: 128, 16>}, {pipeline_mode = #tpu.pipeline_mode<synchronous>, transform_indices = @transform_4, window_bounds = array<i64: 16, 128>}, {transform_indices = @transform_5, window_bounds = array<i64: 8, 128>}]} {
    %c0_i32 = arith.constant 0 : i32
    %0 = arith.cmpi eq, %arg1, %c0_i32 : i32
    %1 = arith.extui %0 : i1 to i32
    %c0_i32_0 = arith.constant 0 : i32
    %2 = arith.cmpi ne, %1, %c0_i32_0 : i32
    scf.if %2 {
      %cst_33 = arith.constant 0.000000e+00 : f32
      %78 = vector.broadcast %cst_33 : f32 to vector<8x16xf32>
      %c0_34 = arith.constant 0 : index
      %c0_35 = arith.constant 0 : index
      %79 = vector.load %arg8[%c0_34, %c0_35] : memref<8x16xf32, #tpu.memory_space<vmem>>, vector<8x16xf32>
      tpu.vector_store %arg8[%c0_34, %c0_35], %78 {strides = array<i32>} : memref<8x16xf32, #tpu.memory_space<vmem>>, vector<8x16xf32>,
    } else {
    }
    %c0 = arith.constant 0 : index
    %c0_1 = arith.constant 0 : index
    %3 = vector.load %arg2[%c0, %c0_1] : memref<8x128xf32, #tpu.memory_space<vmem>>, vector<8x128xf32>
    %c0_2 = arith.constant 0 : index
    %c0_3 = arith.constant 0 : index
    %4 = vector.load %arg3[%c0_2, %c0_3] : memref<8x16xf32, #tpu.memory_space<vmem>>, vector<8x16xf32>
    %c0_4 = arith.constant 0 : index
    %c0_5 = arith.constant 0 : index
    %5 = vector.load %arg4[%c0_4, %c0_5] : memref<8x16xf32, #tpu.memory_space<vmem>>, vector<8x16xf32>
    %c0_6 = arith.constant 0 : index
    %c0_7 = arith.constant 0 : index
    %6 = vector.load %arg5[%c0_6, %c0_7] : memref<128x16xf32, #tpu.memory_space<vmem>>, vector<128x16xf32>
    %c0_8 = arith.constant 0 : index
    %c0_9 = arith.constant 0 : index
    %7 = vector.load %arg6[%c0_8, %c0_9] : memref<16x128xf32, #tpu.memory_space<vmem>>, vector<16x128xf32>
    %cst = arith.constant dense<0xFF800000> : vector<8xf32>
    %8 = vector.multi_reduction <maximumf>, %3, %cst [1] : vector<8x128xf32> to vector<8xf32>
    %9 = vector.shape_cast %8 : vector<8xf32> to vector<8x1xf32>
    %10 = vector.broadcast %9 : vector<8x1xf32> to vector<8x128xf32>
    %11 = arith.subf %3, %10 : vector<8x128xf32>
    %12 = math.exp %11 : vector<8x128xf32>
    %13 = tpu.iota {dimensions = array<i32: 1>} : vector<1x128xi32>
    %c8_i32 = arith.constant 8 : i32
    %c0_i32_10 = arith.constant 0 : i32
    %14 = arith.cmpi eq, %c8_i32, %c0_i32_10 : i32
    %c1_i32 = arith.constant 1 : i32
    %15 = arith.select %14, %c1_i32, %c8_i32 : i32
    %16 = vector.broadcast %15 : i32 to vector<1x128xi32>
    %17 = arith.remsi %13, %16 : vector<1x128xi32>
    %c0_i32_11 = arith.constant 0 : i32
    %18 = vector.broadcast %c0_i32_11 : i32 to vector<1x128xi32>
    %19 = arith.cmpi ne, %17, %18 : vector<1x128xi32>
    %c0_i32_12 = arith.constant 0 : i32
    %20 = vector.broadcast %c0_i32_12 : i32 to vector<1x128xi32>
    %21 = arith.cmpi slt, %17, %20 : vector<1x128xi32>
    %c0_i32_13 = arith.constant 0 : i32
    %22 = arith.cmpi slt, %15, %c0_i32_13 : i32
    %23 = vector.broadcast %22 : i1 to vector<1x128xi1>
    %24 = vector.broadcast %23 : vector<1x128xi1> to vector<1x128xi1>
    %25 = arith.xori %21, %24 : vector<1x128xi1>
    %26 = arith.andi %25, %19 : vector<1x128xi1>
    %27 = vector.broadcast %15 : i32 to vector<1x128xi32>
    %28 = arith.addi %17, %27 : vector<1x128xi32>
    %29 = arith.select %26, %28, %17 : vector<1x128xi1>, vector<1x128xi32>
    %30 = arith.sitofp %29 : vector<1x128xi32> to vector<1x128xf32>
    %cst_14 = arith.constant dense<0.000000e+00> : vector<8x128xf32>
    %31 = tpu.matmul %4, %7, %cst_14 {dimension_numbers = #tpu.dot_dimension_numbers<[1], [0], [0], [1], [0, 0, 1, 1], [], []>} : vector<8x16xf32>, vector<16x128xf32>, vector<8x128xf32> -> vector<8x128xf32>
    %32 = vector.broadcast %30 : vector<1x128xf32> to vector<8x128xf32>
    %33 = arith.cmpf oeq, %31, %32 : vector<8x128xf32>
    %cst_15 = arith.constant 0.000000e+00 : f32
    %34 = vector.broadcast %cst_15 : f32 to vector<8x128xf32>
    %35 = arith.select %33, %11, %34 : vector<8x128xi1>, vector<8x128xf32>
    %36 = arith.truncf %12 : vector<8x128xf32> to vector<8x128xbf16>
    %37 = arith.extf %36 : vector<8x128xbf16> to vector<8x128xf32>
    %38 = arith.subf %12, %37 : vector<8x128xf32>
    %cst_16 = arith.constant dense<0.000000e+00> : vector<8x16xf32>
    %39 = tpu.matmul %37, %6, %cst_16 {dimension_numbers = #tpu.dot_dimension_numbers<[1], [0], [0], [1], [0, 0, 1, 1], [], []>} : vector<8x128xf32>, vector<128x16xf32>, vector<8x16xf32> -> vector<8x16xf32>
    %cst_17 = arith.constant dense<0.000000e+00> : vector<8x16xf32>
    %40 = tpu.matmul %38, %6, %cst_17 {dimension_numbers = #tpu.dot_dimension_numbers<[1], [0], [0], [1], [0, 0, 1, 1], [], []>} : vector<8x128xf32>, vector<128x16xf32>, vector<8x16xf32> -> vector<8x16xf32>
    %41 = arith.addf %39, %40 : vector<8x16xf32>
    %cst_18 = arith.constant 9.99999991E-38 : f32
    %42 = vector.broadcast %cst_18 : f32 to vector<8x16xf32>
    %43 = arith.maximumf %41, %42 : vector<8x16xf32>
    %44 = arith.truncf %35 : vector<8x128xf32> to vector<8x128xbf16>
    %45 = arith.extf %44 : vector<8x128xbf16> to vector<8x128xf32>
    %46 = arith.subf %35, %45 : vector<8x128xf32>
    %cst_19 = arith.constant dense<0.000000e+00> : vector<8x16xf32>
    %47 = tpu.matmul %45, %6, %cst_19 {dimension_numbers = #tpu.dot_dimension_numbers<[1], [0], [0], [1], [0, 0, 1, 1], [], []>} : vector<8x128xf32>, vector<128x16xf32>, vector<8x16xf32> -> vector<8x16xf32>
    %cst_20 = arith.constant dense<0.000000e+00> : vector<8x16xf32>
    %48 = tpu.matmul %46, %6, %cst_20 {dimension_numbers = #tpu.dot_dimension_numbers<[1], [0], [0], [1], [0, 0, 1, 1], [], []>} : vector<8x128xf32>, vector<128x16xf32>, vector<8x16xf32> -> vector<8x16xf32>
    %49 = arith.addf %47, %48 : vector<8x16xf32>
    %50 = math.log %43 : vector<8x16xf32>
    %51 = arith.subf %49, %50 : vector<8x16xf32>
    %52 = math.exp %51 : vector<8x16xf32>
    %cst_21 = arith.constant 1.000000e+00 : f32
    %53 = vector.broadcast %cst_21 : f32 to vector<8x16xf32>
    %54 = arith.subf %53, %52 : vector<8x16xf32>
    %55 = arith.mulf %54, %54 : vector<8x16xf32>
    %56 = arith.mulf %55, %5 : vector<8x16xf32>
    %cst_22 = arith.constant 0.000000e+00 : f32
    %57 = vector.broadcast %cst_22 : f32 to vector<8x16xf32>
    %58 = arith.subf %57, %56 : vector<8x16xf32>
    %59 = arith.mulf %58, %51 : vector<8x16xf32>
    %c1_i32_23 = arith.constant 1 : i32
    %60 = arith.muli %arg0, %c1_i32_23 : i32
    %61 = arith.addi %60, %arg1 : i32
    %c8_i32_24 = arith.constant 8 : i32
    %62 = arith.muli %61, %c8_i32_24 : i32
    %63 = tpu.iota {dimensions = array<i32: 0>} : vector<8x1xi32>
    %64 = vector.broadcast %62 : i32 to vector<8x1xi32>
    %65 = arith.addi %64, %63 : vector<8x1xi32>
    %c0_25 = arith.constant 0 : index
    %c0_26 = arith.constant 0 : index
    %66 = vector.load %arg8[%c0_25, %c0_26] : memref<8x16xf32, #tpu.memory_space<vmem>>, vector<8x16xf32>
    %c1_i32_27 = arith.constant 1 : i32
    %67 = vector.broadcast %c1_i32_27 : i32 to vector<8x1xi32>
    %68 = arith.cmpi slt, %65, %67 : vector<8x1xi32>
    %cst_28 = arith.constant 0.000000e+00 : f32
    %69 = vector.shape_cast %68 : vector<8x1xi1> to vector<8x1xi1>
    %70 = vector.broadcast %69 : vector<8x1xi1> to vector<8x16xi1>
    %71 = vector.broadcast %cst_28 : f32 to vector<8x16xf32>
    %72 = arith.select %70, %59, %71 : vector<8x16xi1>, vector<8x16xf32>
    %73 = arith.addf %66, %72 : vector<8x16xf32>
    %c0_29 = arith.constant 0 : index
    %c0_30 = arith.constant 0 : index
    %74 = vector.load %arg8[%c0_29, %c0_30] : memref<8x16xf32, #tpu.memory_space<vmem>>, vector<8x16xf32>
    tpu.vector_store %arg8[%c0_29, %c0_30], %73 {strides = array<i32>} : memref<8x16xf32, #tpu.memory_space<vmem>>, vector<8x16xf32>,
    %c0_i32_31 = arith.constant 0 : i32
    %75 = arith.cmpi eq, %arg1, %c0_i32_31 : i32
    %76 = arith.extui %75 : i1 to i32
    %c0_i32_32 = arith.constant 0 : i32
    %77 = arith.cmpi ne, %76, %c0_i32_32 : i32
    scf.if %77 {
      %78 = tpu.iota {dimensions = array<i32: 0>} : vector<8x128xi32>
      %79 = tpu.iota {dimensions = array<i32: 1>} : vector<8x128xi32>
      %c0_i32_33 = arith.constant 0 : i32
      %80 = vector.broadcast %c0_i32_33 : i32 to vector<8x128xi32>
      %81 = arith.cmpi eq, %78, %80 : vector<8x128xi32>
      %c0_i32_34 = arith.constant 0 : i32
      %82 = vector.broadcast %c0_i32_34 : i32 to vector<8x128xi32>
      %83 = arith.cmpi eq, %79, %82 : vector<8x128xi32>
      %84 = arith.andi %81, %83 : vector<8x128xi1>
      %c0_35 = arith.constant 0 : index
      %c0_36 = arith.constant 0 : index
      %85 = vector.load %arg8[%c0_35, %c0_36] : memref<8x16xf32, #tpu.memory_space<vmem>>, vector<8x16xf32>
      %86 = vector.shape_cast %85 : vector<8x16xf32> to vector<1x8x16xf32>
      %cst_37 = arith.constant dense<0.000000e+00> : vector<1xf32>
      %87 = vector.multi_reduction <add>, %86, %cst_37 [1, 2] : vector<1x8x16xf32> to vector<1xf32>
      %88 = vector.shape_cast %87 : vector<1xf32> to vector<1x1x1xf32>
      %89 = vector.extract %88[0, 0, 0] : f32 from vector<1x1x1xf32>
      %cst_38 = arith.constant 0.000000e+00 : f32
      %90 = vector.broadcast %89 : f32 to vector<8x128xf32>
      %91 = vector.broadcast %cst_38 : f32 to vector<8x128xf32>
      %92 = arith.select %84, %90, %91 : vector<8x128xi1>, vector<8x128xf32>
      %c0_39 = arith.constant 0 : index
      %c0_40 = arith.constant 0 : index
      %93 = vector.load %arg7[%c0_39, %c0_40] : memref<8x128xf32, #tpu.memory_space<vmem>>, vector<8x128xf32>
      tpu.vector_store %arg7[%c0_39, %c0_40], %92 {strides = array<i32>} : memref<8x128xf32, #tpu.memory_space<vmem>>, vector<8x128xf32>,
    } else {
    }
    return
  }
  func.func @transform_0(%arg0: i32, %arg1: i32) -> (i32, i32) {
    %c1_i32 = arith.constant 1 : i32
    %0 = arith.muli %arg0, %c1_i32 : i32
    %1 = arith.addi %0, %arg1 : i32
    %c0_i32 = arith.constant 0 : i32
    %2 = arith.minsi %1, %c0_i32 : i32
    %c0_i32_0 = arith.constant 0 : i32
    %c0_i32_1 = arith.constant 0 : i32
    return %2, %c0_i32_0 : i32, i32
  }
  func.func @transform_1(%arg0: i32, %arg1: i32) -> (i32, i32) {
    %c1_i32 = arith.constant 1 : i32
    %0 = arith.muli %arg0, %c1_i32 : i32
    %1 = arith.addi %0, %arg1 : i32
    %c0_i32 = arith.constant 0 : i32
    %2 = arith.minsi %1, %c0_i32 : i32
    %c0_i32_0 = arith.constant 0 : i32
    %c0_i32_1 = arith.constant 0 : i32
    return %2, %c0_i32_0 : i32, i32
  }
  func.func @transform_2(%arg0: i32, %arg1: i32) -> (i32, i32) {
    %c1_i32 = arith.constant 1 : i32
    %0 = arith.muli %arg0, %c1_i32 : i32
    %1 = arith.addi %0, %arg1 : i32
    %c0_i32 = arith.constant 0 : i32
    %2 = arith.minsi %1, %c0_i32 : i32
    %c0_i32_0 = arith.constant 0 : i32
    %c0_i32_1 = arith.constant 0 : i32
    return %2, %c0_i32_0 : i32, i32
  }
  func.func @transform_3(%arg0: i32, %arg1: i32) -> (i32, i32) {
    %c0_i32 = arith.constant 0 : i32
    %c0_i32_0 = arith.constant 0 : i32
    %c0_i32_1 = arith.constant 0 : i32
    return %c0_i32, %c0_i32_0 : i32, i32
  }
  func.func @transform_4(%arg0: i32, %arg1: i32) -> (i32, i32) {
    %c0_i32 = arith.constant 0 : i32
    %c0_i32_0 = arith.constant 0 : i32
    %c0_i32_1 = arith.constant 0 : i32
    return %c0_i32, %c0_i32_0 : i32, i32
  }
  func.func @transform_5(%arg0: i32, %arg1: i32) -> (i32, i32) {
    %c0_i32 = arith.constant 0 : i32
    %c0_i32_0 = arith.constant 0 : i32
    return %arg0, %c0_i32 : i32, i32
  }
}

</mosaic_0001>

<llo_original>
// kernel: tpu_custom_call.1
$region0: #{tpu_custom_call.1}
  #allocation0 [shape = 'u32[]', space=smem, size = 0x4, offset = 0x4, fixed_abs, tag = 'smem constant byte address 0x4 - core index']
  #allocation1 [shape = 'u32[144,128]{1,0:T(1,128)}', space=vmem, size = 0x12000, scoped, tag = 'internal scratch']
  #allocation2 [shape = 'f32[8,16]{1,0:T(8,128)}', space=vmem, size = 0x1000, scoped, tag = 'scratch operand']
  %s0 = inlined_call_operand.hbm [shape: f32[8,128], index: 0, kind: input, shape index: {}]
  %s1 = inlined_call_operand.hbm [shape: f32[8,16], index: 1, kind: input, shape index: {}]
  %s2 = inlined_call_operand.hbm [shape: f32[8,16], index: 2, kind: input, shape index: {}]
  %s3 = inlined_call_operand.hbm [shape: f32[128,16], index: 3, kind: input, shape index: {}]
  %s4 = inlined_call_operand.hbm [shape: f32[16,128], index: 4, kind: input, shape index: {}]
  %s5 = inlined_call_operand.hbm [shape: f32[8,128], index: 5, kind: output, shape index: {}]
  %s6 = sld [smem:[#allocation0]]
  $region58: #{tpu_custom_call.1} parent=0
    _
  %s8 = ssub.s32 1, %s6
  %s9 = scalar_select 0, %s8, %s6
  $region1: #{tpu_custom_call.1} parent=0
    #allocation3 [shape = 'u8[4096]{0}', space=vmem, size = 0x1000, scoped, tag = 'input window, operand 0, single buffered']
    #allocation4 [shape = 's32[1]{0}', space=sflag, size = 0x4, scoped, tag = 'scoped memory for tpu_custom_call.1']
    #allocation5 [shape = 's32[1]{0}', space=sflag, size = 0x4, scoped, tag = 'scoped memory for tpu_custom_call.1']
    #allocation6 [shape = 'u8[4096]{0}', space=vmem, size = 0x1000, scoped, tag = 'input window, operand 1, single buffered']
    #allocation7 [shape = 's32[1]{0}', space=sflag, size = 0x4, scoped, tag = 'scoped memory for tpu_custom_call.1']
    #allocation8 [shape = 'u8[4096]{0}', space=vmem, size = 0x1000, scoped, tag = 'input window, operand 2, single buffered']
    #allocation9 [shape = 'u8[65536]{0}', space=vmem, size = 0x10000, scoped, tag = 'input window, operand 3, single buffered']
    #allocation10 [shape = 's32[1]{0}', space=sflag, size = 0x4, scoped, tag = 'scoped memory for tpu_custom_call.1']
    #allocation11 [shape = 'u8[8192]{0}', space=vmem, size = 0x2000, scoped, tag = 'input window, operand 4, single buffered']
    #allocation12 [shape = 'u8[4096]{0}', space=vmem, size = 0x1000, scoped, tag = 'output window, operand 0, single buffered']
    %10 = vsyncpa [#allocation4], 0
    %11 = vsyncpa [#allocation7], 0
    %12 = vsyncpa [#allocation10], 0
    %13 = vsyncpa [#allocation5], 0
    // Predicated region
    $region2: #{tpu_custom_call.1} parent=1 // pred_check
      _
    $region3: #{tpu_custom_call.1} parent=1 // pred_check_branch
      %15 = sbr.rel (0) target = $region5
    $region4: #{tpu_custom_call.1} parent=1 // pred_region
      %s16 = sadd.s32 0, 0
      %p17 = scmp.lt.s32.totalorder %s16, 0
      %s18 = scalar_select %p17, %s16, 0
      %s20 = ssub.s32 128, 128
      %21 = vsyncadd [#allocation4], %s20
      %s22 = smul.addr %s18, 128
      %s23 = scalar_lea.hbm %s0, %s22
      %s25 = sshll.u32 [#allocation3], 4
      %s26 = int_to_ptr.vmem [resolvable:$true] %s25
      %28 = dma.hbm_to_vmem [thread:$0]  %s23, 128, %s26, [#allocation4]
    $region5: #{tpu_custom_call.1} parent=1 // pred_fallthru
      _
    // Predicated region
    $region6: #{tpu_custom_call.1} parent=1 // pred_check
      _
    $region7: #{tpu_custom_call.1} parent=1 // pred_check_branch
      %30 = sbr.rel (0) target = $region9
    $region8: #{tpu_custom_call.1} parent=1 // pred_region
      %s31 = sadd.s32 0, 0
      %p32 = scmp.lt.s32.totalorder %s31, 0
      %s33 = scalar_select %p32, %s31, 0
      %s35 = ssub.s32 128, 128
      %36 = vsyncadd [#allocation7], %s35
      %s37 = smul.addr %s33, 128
      %s38 = scalar_lea.hbm %s1, %s37
      %s40 = sshll.u32 [#allocation6], 4
      %s41 = int_to_ptr.vmem [resolvable:$true] %s40
      %43 = dma.hbm_to_vmem [thread:$0]  %s38, 128, %s41, [#allocation7]
    $region9: #{tpu_custom_call.1} parent=1 // pred_fallthru
      _
    // Predicated region
    $region10: #{tpu_custom_call.1} parent=1 // pred_check
      _
    $region11: #{tpu_custom_call.1} parent=1 // pred_check_branch
      %45 = sbr.rel (0) target = $region13
    $region12: #{tpu_custom_call.1} parent=1 // pred_region
      %s46 = sadd.s32 0, 0
      %p47 = scmp.lt.s32.totalorder %s46, 0
      %s48 = scalar_select %p47, %s46, 0
      %s50 = ssub.s32 128, 128
      %51 = vsyncadd [#allocation7], %s50
      %s52 = smul.addr %s48, 128
      %s53 = scalar_lea.hbm %s2, %s52
      %s55 = sshll.u32 [#allocation8], 4
      %s56 = int_to_ptr.vmem [resolvable:$true] %s55
      %58 = dma.hbm_to_vmem [thread:$0]  %s53, 128, %s56, [#allocation7]
    $region13: #{tpu_custom_call.1} parent=1 // pred_fallthru
      _
    // Predicated region
    $region14: #{tpu_custom_call.1} parent=1 // pred_check
      _
    $region15: #{tpu_custom_call.1} parent=1 // pred_check_branch
      %60 = sbr.rel (0) target = $region17
    $region16: #{tpu_custom_call.1} parent=1 // pred_region
      %s62 = ssub.s32 2048, 2048
      %63 = vsyncadd [#allocation10], %s62
      %s64 = sshll.u32 [#allocation9], 4
      %s65 = int_to_ptr.vmem [resolvable:$true] %s64
      %70 = dma.hbm_to_vmem [thread:$0]  %s3, 2048, %s65, [#allocation10], 128, 128, 8
    $region17: #{tpu_custom_call.1} parent=1 // pred_fallthru
      _
    // Predicated region
    $region18: #{tpu_custom_call.1} parent=1 // pred_check
      _
    $region19: #{tpu_custom_call.1} parent=1 // pred_check_branch
      %72 = sbr.rel (0) target = $region21
    $region20: #{tpu_custom_call.1} parent=1 // pred_region
      %s74 = ssub.s32 256, 256
      %75 = vsyncadd [#allocation10], %s74
      %s76 = sshll.u32 [#allocation11], 4
      %s77 = int_to_ptr.vmem [resolvable:$true] %s76
      %82 = dma.hbm_to_vmem [thread:$0]  %s4, 256, %s77, [#allocation10], 128, 128, 8
    $region21: #{tpu_custom_call.1} parent=1 // pred_fallthru
      _
    // Predicated region
    $region22: #{tpu_custom_call.1} parent=1 // pred_check
      _
    $region23: #{tpu_custom_call.1} parent=1 // pred_check_branch
      %84 = sbr.rel (0) target = $region25
    $region24: #{tpu_custom_call.1} parent=1 // pred_region
      %85 = dma.done [#allocation4], 128
    $region25: #{tpu_custom_call.1} parent=1 // pred_fallthru
      _
    // Predicated region
    $region26: #{tpu_custom_call.1} parent=1 // pred_check
      _
    $region27: #{tpu_custom_call.1} parent=1 // pred_check_branch
      %87 = sbr.rel (0) target = $region29
    $region28: #{tpu_custom_call.1} parent=1 // pred_region
      %88 = dma.done [#allocation7], 128
    $region29: #{tpu_custom_call.1} parent=1 // pred_fallthru
      _
    // Predicated region
    $region30: #{tpu_custom_call.1} parent=1 // pred_check
      _
    $region31: #{tpu_custom_call.1} parent=1 // pred_check_branch
      %90 = sbr.rel (0) target = $region33
    $region32: #{tpu_custom_call.1} parent=1 // pred_region
      %91 = dma.done [#allocation7], 128
    $region33: #{tpu_custom_call.1} parent=1 // pred_fallthru
      _
    // Predicated region
    $region34: #{tpu_custom_call.1} parent=1 // pred_check
      _
    $region35: #{tpu_custom_call.1} parent=1 // pred_check_branch
      %93 = sbr.rel (0) target = $region37
    $region36: #{tpu_custom_call.1} parent=1 // pred_region
      %94 = dma.done [#allocation10], 2048
    $region37: #{tpu_custom_call.1} parent=1 // pred_fallthru
      _
    // Predicated region
    $region38: #{tpu_custom_call.1} parent=1 // pred_check
      _
    $region39: #{tpu_custom_call.1} parent=1 // pred_check_branch
      %96 = sbr.rel (0) target = $region41
    $region40: #{tpu_custom_call.1} parent=1 // pred_region
      %97 = dma.done [#allocation10], 256
    $region41: #{tpu_custom_call.1} parent=1 // pred_fallthru
      _
    %s98 = sadd.s32 0, 0
    %p99 = scmp.lt.s32.totalorder %s98, 0
    %s100 = scalar_select %p99, %s98, 0
    %s101 = sadd.s32 0, 0
    %p102 = scmp.lt.s32.totalorder %s101, 0
    %s103 = scalar_select %p102, %s101, 0
    %s104 = sadd.s32 0, 0
    %p105 = scmp.lt.s32.totalorder %s104, 0
    %s106 = scalar_select %p105, %s104, 0
    %p107 = scmp.eq.s32.totalorder 0, 0
    // Predicated region
    $region42: #{tpu_custom_call.1} parent=1 // pred_check
      %p108 = pneg %p107
    $region43: #{tpu_custom_call.1} parent=1 // pred_check_branch
      %110 = sbr.rel (%p108) target = $region45
    $region44: #{tpu_custom_call.1} parent=1 // pred_region
      %vm111 = vcmask 130048
      %112 = vst.msk [vmem:[#allocation2] sm:$0xff] %vm111, 0.0
    $region45: #{tpu_custom_call.1} parent=1 // pred_fallthru
      _
    %v113 = vld [vmem:[#allocation3] sm:$0xff]
    %v114 = vld [vmem:[#allocation6] sm:$0xff]
    %v115 = vld [vmem:[#allocation8] sm:$0xff]
    %v116 = vld [vmem:[#allocation9] sm:$0xff]
    %v117 = vld [vmem:[#allocation9 + $0x8] sm:$0xff]
    %v118 = vld [vmem:[#allocation9 + $0x10] sm:$0xff]
    %v119 = vld [vmem:[#allocation9 + $0x18] sm:$0xff]
    %v120 = vld [vmem:[#allocation9 + $0x20] sm:$0xff]
    %v121 = vld [vmem:[#allocation9 + $0x28] sm:$0xff]
    %v122 = vld [vmem:[#allocation9 + $0x30] sm:$0xff]
    %v123 = vld [vmem:[#allocation9 + $0x38] sm:$0xff]
    %v124 = vld [vmem:[#allocation9 + $0x40] sm:$0xff]
    %v125 = vld [vmem:[#allocation9 + $0x48] sm:$0xff]
    %v126 = vld [vmem:[#allocation9 + $0x50] sm:$0xff]
    %v127 = vld [vmem:[#allocation9 + $0x58] sm:$0xff]
    %v128 = vld [vmem:[#allocation9 + $0x60] sm:$0xff]
    %v129 = vld [vmem:[#allocation9 + $0x68] sm:$0xff]
    %v130 = vld [vmem:[#allocation9 + $0x70] sm:$0xff]
    %v131 = vld [vmem:[#allocation9 + $0x78] sm:$0xff]
    %v132 = vld [vmem:[#allocation11] sm:$0xff]
    %v133 = vld [vmem:[#allocation11 + $0x8] sm:$0xff]
    %134 = vmax.xlane.f32.xlu0 %v113
    %v135 = vpop.xlane.xlu0 %134
    %v136 = vsub.f32 %v113, %v135
    %v137 = vmul.f32 %v136, 1.442695
    %v138 = vpow.pop %v137
    %v139 = vlaneseq
    %v140 = vand.u32 %v139, 127
    %vm141 = vcmp.lt.s32.totalorder %v140, 0
    %v142 = vsub.s32 0, %v140
    %v143 = vsel %vm141, %v142, %v140
    %v144 = vshrl.u32 %v143, 3
    %v145 = vand.u32 %v143, 7
    %v146 = vsub.s32 0, %v145
    %v147 = vsel %vm141, %v146, %v145
    %vm148 = vcmp.ne.s32.totalorder %v147, 0
    %vm149 = vcmp.lt.s32.totalorder %v147, 0
    %vm150 = vmand %vm149, %vm148
    %v151 = vadd.s32 %v147, 8
    %v152 = vsel %vm150, %v151, %v147
    %v153 = vcvt.s32.f32 %v152
    %vm154 = vcmask 130048
    %v156 = vsel %vm154, %v114, 0
    %158 = vmatprep.subr.mxu0 0.0
    %159 = vmatpush1.msra.mxu0 %v132
    %160 = vmatprep.subr.mxu0 0.0
    %161 = vmatpush1.msra.mxu0 %v133
    %162 = vmatprep.subr.mxu0 0.0
    %163 = vmatpush1.msra.mxu0 0.0
    %164 = vmatprep.subr.mxu0 0.0
    %165 = vmatpush1.msra.mxu0 0.0
    %166 = vmatprep.subr.mxu0 0.0
    %167 = vmatpush1.msra.mxu0 0.0
    %168 = vmatprep.subr.mxu0 0.0
    %169 = vmatpush1.msra.mxu0 0.0
    %170 = vmatprep.subr.mxu0 0.0
    %171 = vmatpush1.msra.mxu0 0.0
    %172 = vmatprep.subr.mxu0 0.0
    %173 = vmatpush1.msra.mxu0 0.0
    %174 = vmatprep.subr.mxu0 0.0
    %175 = vmatpush1.msra.mxu0 0.0
    %176 = vmatprep.subr.mxu0 0.0
    %177 = vmatpush1.msra.mxu0 0.0
    %178 = vmatprep.subr.mxu0 0.0
    %179 = vmatpush1.msra.mxu0 0.0
    %180 = vmatprep.subr.mxu0 0.0
    %181 = vmatpush1.msra.mxu0 0.0
    %182 = vmatprep.subr.mxu0 0.0
    %183 = vmatpush1.msra.mxu0 0.0
    %184 = vmatprep.subr.mxu0 0.0
    %185 = vmatpush1.msra.mxu0 0.0
    %186 = vmatprep.subr.mxu0 0.0
    %187 = vmatpush1.msra.mxu0 0.0
    %188 = vmatprep.subr.mxu0 0.0
    %189 = vmatpush1.msra.mxu0 0.0
    %190 = vmatprep.subr.mxu0 0.0
    %191 = vmatpush1.msra.mxu0 0.0
    %192 = vmatprep.subr.mxu0 0.0
    %193 = vmatpush1.msra.mxu0 0.0
    %194 = vmatprep.subr.mxu0 0.0
    %195 = vmatpush1.msra.mxu0 0.0
    %196 = vmatprep.subr.mxu0 0.0
    %197 = vmatpush1.msra.mxu0 0.0
    %198 = vmatprep.subr.mxu0 0.0
    %199 = vmatpush1.msra.mxu0 0.0
    %200 = vmatprep.subr.mxu0 0.0
    %201 = vmatpush1.msra.mxu0 0.0
    %202 = vmatprep.subr.mxu0 0.0
    %203 = vmatpush1.msra.mxu0 0.0
    %204 = vmatprep.subr.mxu0 0.0
    %205 = vmatpush1.msra.mxu0 0.0
    %206 = vmatprep.subr.mxu0 0.0
    %207 = vmatpush1.msra.mxu0 0.0
    %208 = vmatprep.subr.mxu0 0.0
    %209 = vmatpush1.msra.mxu0 0.0
    %210 = vmatprep.subr.mxu0 0.0
    %211 = vmatpush1.msra.mxu0 0.0
    %212 = vmatprep.subr.mxu0 0.0
    %213 = vmatpush1.msra.mxu0 0.0
    %214 = vmatprep.subr.mxu0 0.0
    %215 = vmatpush1.msra.mxu0 0.0
    %216 = vmatprep.subr.mxu0 0.0
    %217 = vmatpush1.msra.mxu0 0.0
    %218 = vmatprep.subr.mxu0 0.0
    %219 = vmatpush1.msra.mxu0 0.0
    %220 = vmatprep.subr.mxu0 0.0
    %221 = vmatpush1.msra.mxu0 0.0
    %222 = vmatprep.mubr.f32.mxu0 0.0
    %223 = vmatmul.mubr.f32.gmra.mrb[0].mxu0 %v156
    %v224 = vpop.f32.mrb[0].mxu0
    %v225 = vadd.f32 0.0, %v224
    %v226 = vpop.f32.mrb[0].mxu0
    %227 = vdwg.mxu0
    %vm228 = vcmp.eq.f32.partialorder %v225, %v153
    %v229 = vsel %vm228, %v136, 0.0
    %v230 = vpack.c.bf16 %v138, %v138
    %v231 = vunpack.c.l.bf16 %v230
    %v232 = vsub.f32 %v138, %v231
    %233 = vmatprep.subr.mxu0 0.0
    %234 = vmatpush1.msra.mxu0 %v116
    %235 = vmatprep.subr.mxu0 0.0
    %236 = vmatpush1.msra.mxu0 %v117
    %237 = vmatprep.subr.mxu0 0.0
    %238 = vmatpush1.msra.mxu0 %v118
    %239 = vmatprep.subr.mxu0 0.0
    %240 = vmatpush1.msra.mxu0 %v119
    %241 = vmatprep.subr.mxu0 0.0
    %242 = vmatpush1.msra.mxu0 %v120
    %243 = vmatprep.subr.mxu0 0.0
    %244 = vmatpush1.msra.mxu0 %v121
    %245 = vmatprep.subr.mxu0 0.0
    %246 = vmatpush1.msra.mxu0 %v122
    %247 = vmatprep.subr.mxu0 0.0
    %248 = vmatpush1.msra.mxu0 %v123
    %249 = vmatprep.subr.mxu0 0.0
    %250 = vmatpush1.msra.mxu0 %v124
    %251 = vmatprep.subr.mxu0 0.0
    %252 = vmatpush1.msra.mxu0 %v125
    %253 = vmatprep.subr.mxu0 0.0
    %254 = vmatpush1.msra.mxu0 %v126
    %255 = vmatprep.subr.mxu0 0.0
    %256 = vmatpush1.msra.mxu0 %v127
    %257 = vmatprep.subr.mxu0 0.0
    %258 = vmatpush1.msra.mxu0 %v128
    %259 = vmatprep.subr.mxu0 0.0
    %260 = vmatpush1.msra.mxu0 %v129
    %261 = vmatprep.subr.mxu0 0.0
    %262 = vmatpush1.msra.mxu0 %v130
    %263 = vmatprep.subr.mxu0 0.0
    %264 = vmatpush1.msra.mxu0 %v131
    %265 = vmatprep.subr.mxu0 0.0
    %266 = vmatpush1.msra.mxu0 0.0
    %267 = vmatprep.subr.mxu0 0.0
    %268 = vmatpush1.msra.mxu0 0.0
    %269 = vmatprep.subr.mxu0 0.0
    %270 = vmatpush1.msra.mxu0 0.0
    %271 = vmatprep.subr.mxu0 0.0
    %272 = vmatpush1.msra.mxu0 0.0
    %273 = vmatprep.subr.mxu0 0.0
    %274 = vmatpush1.msra.mxu0 0.0
    %275 = vmatprep.subr.mxu0 0.0
    %276 = vmatpush1.msra.mxu0 0.0
    %277 = vmatprep.subr.mxu0 0.0
    %278 = vmatpush1.msra.mxu0 0.0
    %279 = vmatprep.subr.mxu0 0.0
    %280 = vmatpush1.msra.mxu0 0.0
    %281 = vmatprep.subr.mxu0 0.0
    %282 = vmatpush1.msra.mxu0 0.0
    %283 = vmatprep.subr.mxu0 0.0
    %284 = vmatpush1.msra.mxu0 0.0
    %285 = vmatprep.subr.mxu0 0.0
    %286 = vmatpush1.msra.mxu0 0.0
    %287 = vmatprep.subr.mxu0 0.0
    %288 = vmatpush1.msra.mxu0 0.0
    %289 = vmatprep.subr.mxu0 0.0
    %290 = vmatpush1.msra.mxu0 0.0
    %291 = vmatprep.subr.mxu0 0.0
    %292 = vmatpush1.msra.mxu0 0.0
    %293 = vmatprep.subr.mxu0 0.0
    %294 = vmatpush1.msra.mxu0 0.0
    %295 = vmatprep.subr.mxu0 0.0
    %296 = vmatpush1.msra.mxu0 0.0
    %297 = vmatprep.mubr.f32.mxu0 0.0
    %298 = vmatmul.mubr.f32.gmra.mrb[0].mxu0 %v232
    %v299 = vpop.f32.mrb[0].mxu0
    %v300 = vadd.f32 0.0, %v299
    %v301 = vpop.f32.mrb[0].mxu0
    %302 = vdwg.mxu0
    %303 = vmatprep.subr.mxu0 0.0
    %304 = vmatpush1.msra.mxu0 %v116
    %305 = vmatprep.subr.mxu0 0.0
    %306 = vmatpush1.msra.mxu0 %v117
    %307 = vmatprep.subr.mxu0 0.0
    %308 = vmatpush1.msra.mxu0 %v118
    %309 = vmatprep.subr.mxu0 0.0
    %310 = vmatpush1.msra.mxu0 %v119
    %311 = vmatprep.subr.mxu0 0.0
    %312 = vmatpush1.msra.mxu0 %v120
    %313 = vmatprep.subr.mxu0 0.0
    %314 = vmatpush1.msra.mxu0 %v121
    %315 = vmatprep.subr.mxu0 0.0
    %316 = vmatpush1.msra.mxu0 %v122
    %317 = vmatprep.subr.mxu0 0.0
    %318 = vmatpush1.msra.mxu0 %v123
    %319 = vmatprep.subr.mxu0 0.0
    %320 = vmatpush1.msra.mxu0 %v124
    %321 = vmatprep.subr.mxu0 0.0
    %322 = vmatpush1.msra.mxu0 %v125
    %323 = vmatprep.subr.mxu0 0.0
    %324 = vmatpush1.msra.mxu0 %v126
    %325 = vmatprep.subr.mxu0 0.0
    %326 = vmatpush1.msra.mxu0 %v127
    %327 = vmatprep.subr.mxu0 0.0
    %328 = vmatpush1.msra.mxu0 %v128
    %329 = vmatprep.subr.mxu0 0.0
    %330 = vmatpush1.msra.mxu0 %v129
    %331 = vmatprep.subr.mxu0 0.0
    %332 = vmatpush1.msra.mxu0 %v130
    %333 = vmatprep.subr.mxu0 0.0
    %334 = vmatpush1.msra.mxu0 %v131
    %335 = vmatprep.subr.mxu0 0.0
    %336 = vmatpush1.msra.mxu0 0.0
    %337 = vmatprep.subr.mxu0 0.0
    %338 = vmatpush1.msra.mxu0 0.0
    %339 = vmatprep.subr.mxu0 0.0
    %340 = vmatpush1.msra.mxu0 0.0
    %341 = vmatprep.subr.mxu0 0.0
    %342 = vmatpush1.msra.mxu0 0.0
    %343 = vmatprep.subr.mxu0 0.0
    %344 = vmatpush1.msra.mxu0 0.0
    %345 = vmatprep.subr.mxu0 0.0
    %346 = vmatpush1.msra.mxu0 0.0
    %347 = vmatprep.subr.mxu0 0.0
    %348 = vmatpush1.msra.mxu0 0.0
    %349 = vmatprep.subr.mxu0 0.0
    %350 = vmatpush1.msra.mxu0 0.0
    %351 = vmatprep.subr.mxu0 0.0
    %352 = vmatpush1.msra.mxu0 0.0
    %353 = vmatprep.subr.mxu0 0.0
    %354 = vmatpush1.msra.mxu0 0.0
    %355 = vmatprep.subr.mxu0 0.0
    %356 = vmatpush1.msra.mxu0 0.0
    %357 = vmatprep.subr.mxu0 0.0
    %358 = vmatpush1.msra.mxu0 0.0
    %359 = vmatprep.subr.mxu0 0.0
    %360 = vmatpush1.msra.mxu0 0.0
    %361 = vmatprep.subr.mxu0 0.0
    %362 = vmatpush1.msra.mxu0 0.0
    %363 = vmatprep.subr.mxu0 0.0
    %364 = vmatpush1.msra.mxu0 0.0
    %365 = vmatprep.subr.mxu0 0.0
    %366 = vmatpush1.msra.mxu0 0.0
    %367 = vmatprep.mubr.f32.mxu0 0.0
    %368 = vmatmul.mubr.f32.gmra.mrb[0].mxu0 %v231
    %v369 = vpop.f32.mrb[0].mxu0
    %v370 = vadd.f32 %v300, %v369
    %v371 = vpop.f32.mrb[0].mxu0
    %372 = vdwg.mxu0
    %v373 = vmax.f32 %v370, 1e-37
    %v374 = vpack.c.bf16 %v229, %v229
    %v375 = vunpack.c.l.bf16 %v374
    %v376 = vsub.f32 %v229, %v375
    %377 = vmatprep.subr.mxu0 0.0
    %378 = vmatpush1.msra.mxu0 %v116
    %379 = vmatprep.subr.mxu0 0.0
    %380 = vmatpush1.msra.mxu0 %v117
    %381 = vmatprep.subr.mxu0 0.0
    %382 = vmatpush1.msra.mxu0 %v118
    %383 = vmatprep.subr.mxu0 0.0
    %384 = vmatpush1.msra.mxu0 %v119
    %385 = vmatprep.subr.mxu0 0.0
    %386 = vmatpush1.msra.mxu0 %v120
    %387 = vmatprep.subr.mxu0 0.0
    %388 = vmatpush1.msra.mxu0 %v121
    %389 = vmatprep.subr.mxu0 0.0
    %390 = vmatpush1.msra.mxu0 %v122
    %391 = vmatprep.subr.mxu0 0.0
    %392 = vmatpush1.msra.mxu0 %v123
    %393 = vmatprep.subr.mxu0 0.0
    %394 = vmatpush1.msra.mxu0 %v124
    %395 = vmatprep.subr.mxu0 0.0
    %396 = vmatpush1.msra.mxu0 %v125
    %397 = vmatprep.subr.mxu0 0.0
    %398 = vmatpush1.msra.mxu0 %v126
    %399 = vmatprep.subr.mxu0 0.0
    %400 = vmatpush1.msra.mxu0 %v127
    %401 = vmatprep.subr.mxu0 0.0
    %402 = vmatpush1.msra.mxu0 %v128
    %403 = vmatprep.subr.mxu0 0.0
    %404 = vmatpush1.msra.mxu0 %v129
    %405 = vmatprep.subr.mxu0 0.0
    %406 = vmatpush1.msra.mxu0 %v130
    %407 = vmatprep.subr.mxu0 0.0
    %408 = vmatpush1.msra.mxu0 %v131
    %409 = vmatprep.subr.mxu0 0.0
    %410 = vmatpush1.msra.mxu0 0.0
    %411 = vmatprep.subr.mxu0 0.0
    %412 = vmatpush1.msra.mxu0 0.0
    %413 = vmatprep.subr.mxu0 0.0
    %414 = vmatpush1.msra.mxu0 0.0
    %415 = vmatprep.subr.mxu0 0.0
    %416 = vmatpush1.msra.mxu0 0.0
    %417 = vmatprep.subr.mxu0 0.0
    %418 = vmatpush1.msra.mxu0 0.0
    %419 = vmatprep.subr.mxu0 0.0
    %420 = vmatpush1.msra.mxu0 0.0
    %421 = vmatprep.subr.mxu0 0.0
    %422 = vmatpush1.msra.mxu0 0.0
    %423 = vmatprep.subr.mxu0 0.0
    %424 = vmatpush1.msra.mxu0 0.0
    %425 = vmatprep.subr.mxu0 0.0
    %426 = vmatpush1.msra.mxu0 0.0
    %427 = vmatprep.subr.mxu0 0.0
    %428 = vmatpush1.msra.mxu0 0.0
    %429 = vmatprep.subr.mxu0 0.0
    %430 = vmatpush1.msra.mxu0 0.0
    %431 = vmatprep.subr.mxu0 0.0
    %432 = vmatpush1.msra.mxu0 0.0
    %433 = vmatprep.subr.mxu0 0.0
    %434 = vmatpush1.msra.mxu0 0.0
    %435 = vmatprep.subr.mxu0 0.0
    %436 = vmatpush1.msra.mxu0 0.0
    %437 = vmatprep.subr.mxu0 0.0
    %438 = vmatpush1.msra.mxu0 0.0
    %439 = vmatprep.subr.mxu0 0.0
    %440 = vmatpush1.msra.mxu0 0.0
    %441 = vmatprep.mubr.f32.mxu0 0.0
    %442 = vmatmul.mubr.f32.gmra.mrb[0].mxu0 %v376
    %v443 = vpop.f32.mrb[0].mxu0
    %v444 = vadd.f32 0.0, %v443
    %v445 = vpop.f32.mrb[0].mxu0
    %446 = vdwg.mxu0
    %447 = vmatprep.subr.mxu0 0.0
    %448 = vmatpush1.msra.mxu0 %v116
    %449 = vmatprep.subr.mxu0 0.0
    %450 = vmatpush1.msra.mxu0 %v117
    %451 = vmatprep.subr.mxu0 0.0
    %452 = vmatpush1.msra.mxu0 %v118
    %453 = vmatprep.subr.mxu0 0.0
    %454 = vmatpush1.msra.mxu0 %v119
    %455 = vmatprep.subr.mxu0 0.0
    %456 = vmatpush1.msra.mxu0 %v120
    %457 = vmatprep.subr.mxu0 0.0
    %458 = vmatpush1.msra.mxu0 %v121
    %459 = vmatprep.subr.mxu0 0.0
    %460 = vmatpush1.msra.mxu0 %v122
    %461 = vmatprep.subr.mxu0 0.0
    %462 = vmatpush1.msra.mxu0 %v123
    %463 = vmatprep.subr.mxu0 0.0
    %464 = vmatpush1.msra.mxu0 %v124
    %465 = vmatprep.subr.mxu0 0.0
    %466 = vmatpush1.msra.mxu0 %v125
    %467 = vmatprep.subr.mxu0 0.0
    %468 = vmatpush1.msra.mxu0 %v126
    %469 = vmatprep.subr.mxu0 0.0
    %470 = vmatpush1.msra.mxu0 %v127
    %471 = vmatprep.subr.mxu0 0.0
    %472 = vmatpush1.msra.mxu0 %v128
    %473 = vmatprep.subr.mxu0 0.0
    %474 = vmatpush1.msra.mxu0 %v129
    %475 = vmatprep.subr.mxu0 0.0
    %476 = vmatpush1.msra.mxu0 %v130
    %477 = vmatprep.subr.mxu0 0.0
    %478 = vmatpush1.msra.mxu0 %v131
    %479 = vmatprep.subr.mxu0 0.0
    %480 = vmatpush1.msra.mxu0 0.0
    %481 = vmatprep.subr.mxu0 0.0
    %482 = vmatpush1.msra.mxu0 0.0
    %483 = vmatprep.subr.mxu0 0.0
    %484 = vmatpush1.msra.mxu0 0.0
    %485 = vmatprep.subr.mxu0 0.0
    %486 = vmatpush1.msra.mxu0 0.0
    %487 = vmatprep.subr.mxu0 0.0
    %488 = vmatpush1.msra.mxu0 0.0
    %489 = vmatprep.subr.mxu0 0.0
    %490 = vmatpush1.msra.mxu0 0.0
    %491 = vmatprep.subr.mxu0 0.0
    %492 = vmatpush1.msra.mxu0 0.0
    %493 = vmatprep.subr.mxu0 0.0
    %494 = vmatpush1.msra.mxu0 0.0
    %495 = vmatprep.subr.mxu0 0.0
    %496 = vmatpush1.msra.mxu0 0.0
    %497 = vmatprep.subr.mxu0 0.0
    %498 = vmatpush1.msra.mxu0 0.0
    %499 = vmatprep.subr.mxu0 0.0
    %500 = vmatpush1.msra.mxu0 0.0
    %501 = vmatprep.subr.mxu0 0.0
    %502 = vmatpush1.msra.mxu0 0.0
    %503 = vmatprep.subr.mxu0 0.0
    %504 = vmatpush1.msra.mxu0 0.0
    %505 = vmatprep.subr.mxu0 0.0
    %506 = vmatpush1.msra.mxu0 0.0
    %507 = vmatprep.subr.mxu0 0.0
    %508 = vmatpush1.msra.mxu0 0.0
    %509 = vmatprep.subr.mxu0 0.0
    %510 = vmatpush1.msra.mxu0 0.0
    %511 = vmatprep.mubr.f32.mxu0 0.0
    %512 = vmatmul.mubr.f32.gmra.mrb[0].mxu0 %v375
    %v513 = vpop.f32.mrb[0].mxu0
    %v514 = vadd.f32 %v444, %v513
    %v515 = vpop.f32.mrb[0].mxu0
    %516 = vdwg.mxu0
    %v517 = vlog2.pop %v373
    %v518 = vmul.f32 %v517, 0.6931472
    %v519 = vsub.f32 %v514, %v518
    %v520 = vmul.f32 %v519, 1.442695
    %v521 = vpow.pop %v520
    %v522 = vsub.f32 1.0, %v521
    %v523 = vmul.f32 %v522, %v522
    %v524 = vmul.f32 %v523, %v115
    %v525 = vsub.f32 0.0, %v524
    %v526 = vmul.f32 %v525, %v519
    %s527 = sadd.s32 0, 0
    %s528 = smul.u32 %s527, 8
    %v529 = vlaneseq
    %v530 = vshrl.u32 %v529, 7
    %v531 = vstv %s528
    %v532 = vadd.s32 %v531, %v530
    %v533 = vld [vmem:[#allocation2] sm:$0xff]
    %vm534 = vcmp.lt.s32.totalorder %v532, 1
    %v535 = vsel %vm534, 1, 0
    %vm536 = vcmp.eq.s32.totalorder %v535, 1
    %v537 = vsel %vm536, %v526, 0.0
    %v538 = vadd.f32 %v533, %v537
    %539 = vst.msk [vmem:[#allocation2] sm:$0xff] %vm154, %v538
    // Predicated region
    $region46: #{tpu_custom_call.1} parent=1 // pred_check
      %p540 = pneg %p107
    $region47: #{tpu_custom_call.1} parent=1 // pred_check_branch
      %542 = sbr.rel (%p540) target = $region49
    $region48: #{tpu_custom_call.1} parent=1 // pred_region
      %vm543 = vcmp.eq.s32.totalorder %v530, 0
      %vm544 = vcmp.eq.s32.totalorder %v140, 0
      %vm545 = vmand %vm543, %vm544
      %v546 = vld [vmem:[#allocation2] sm:$0xff]
      %v547 = vsel %vm154, %v546, 0.0
      %548 = vadd.xlane.f32.xlu0 %v547
      %v549 = vpop.xlane.xlu0 %548
      %v550 = vrot.slane %v549, 4
      %v551 = vadd.f32 %v549, %v550
      %v552 = vrot.slane %v551, 2
      %v553 = vadd.f32 %v551, %v552
      %v554 = vrot.slane %v553, 1
      %v555 = vadd.f32 %v553, %v554
      %s556 = vtos %v555
      %v557 = vstv %s556
      %v558 = vsel %vm545, %v557, 0.0
      %559 = vst [vmem:[#allocation12] sm:$0xff] %v558
    $region49: #{tpu_custom_call.1} parent=1 // pred_fallthru
      _
    // Predicated region
    $region50: #{tpu_custom_call.1} parent=1 // pred_check
      _
    $region51: #{tpu_custom_call.1} parent=1 // pred_check_branch
      %561 = sbr.rel (0) target = $region53
    $region52: #{tpu_custom_call.1} parent=1 // pred_region
      %s563 = ssub.s32 128, 128
      %564 = vsyncadd [#allocation5], %s563
      %s566 = sshll.u32 [#allocation12], 4
      %s567 = int_to_ptr.vmem [resolvable:$true] %s566
      %569 = dma.vmem_to_hbm [thread:$0]  %s567, 128, %s5, [#allocation5]
    $region53: #{tpu_custom_call.1} parent=1 // pred_fallthru
      _
    // Predicated region
    $region54: #{tpu_custom_call.1} parent=1 // pred_check
      _
    $region55: #{tpu_custom_call.1} parent=1 // pred_check_branch
      %571 = sbr.rel (0) target = $region57
    $region56: #{tpu_custom_call.1} parent=1 // pred_region
      %572 = dma.done [#allocation5], 128
    $region57: #{tpu_custom_call.1} parent=1 // pred_fallthru
      _
    %573 = vsyncpa [#allocation4], 1
    %574 = vsyncpa [#allocation7], 1
    %575 = vsyncpa [#allocation10], 1
    %576 = vsyncpa [#allocation5], 1

</llo_original>
